<compile_context>
chip_gen: v6e
topology: v6e:2x2x1
jax: 0.10.0
libtpu: 0.0.40
codegen_flags: <defaults>
</compile_context>

<pallas_src>
import math

import jax
import jax.numpy as jnp
from jax.experimental import pallas as pl
from jax.experimental.pallas import tpu as pltpu


def bell_mf_kernel(x_ref, rep_ref, inv_a_ref, b_ref, c_ref, o_ref):
    # x_ref: (tr, K)  rep_ref: (K, W)  inv_a/b/c_ref: (1, W)  o_ref: (tr, W)
    # Replicate each x value to its M membership-function lanes on the MXU
    # (one-hot replication matrix), instead of materializing the repeat in HBM.
    x_rep = jnp.dot(x_ref[...].astype(jnp.float32), rep_ref[...],
                    preferred_element_type=jnp.float32)          # MXU (idle otherwise)
    z = (x_rep - c_ref[...]) * inv_a_ref[...]                    # VPU: sub + mul
    t2 = z * z                                                   # VPU: |z|^2 (abs fused)
    # 1 / (1 + t2**b) == 0.5 * (1 - tanh(0.5 * b * log(t2)))   (for b > 0)
    # EUP: log + tanh only.  t2 == 0 -> -inf -> tanh -> -1 -> output 1 (matches
    # torch 0**(2b) == 0).  NOTE: b == 0 would give NaN where torch's pow(0,0)
    # is 1; the module initializes b = 1 and it stays positive in practice.
    u = (0.5 * b_ref[...]) * jnp.log(t2)
    o_ref[...] = (0.5 * (1.0 - jnp.tanh(u))).astype(o_ref.dtype)


def bell_mf(x, a, b, c, *, target_tile_bytes=None, vmem_limit_bytes=None,
            out_dtype=None):
    B, F = x.shape
    F2, M = a.shape
    assert F == F2 and b.shape == (F, M) and c.shape == (F, M)
    L = F * M
    N = B * L
    out_dtype = x.dtype if out_dtype is None else out_dtype
    f32 = jnp.float32

    # Lane width: smallest common multiple of 128 (vreg lanes) and L, so every
    # row of the flat (rows, W) view sees the same per-lane parameter pattern
    # and every store is a full-width, unmasked vst.
    W = (L * 128) // math.gcd(L, 128)
    if W * 4 > (1 << 22):
        # TODO(synk): tile the lane axis with a second grid dim for very large F*M.
        raise NotImplementedError("F*M too large for the single-lane-axis layout")
    K = W // M  # number of x values feeding one row of W output lanes

    # Per-generation budgets: v5e/v6e have 128 MiB physical VMEM, v7x has 64 MiB.
    if target_tile_bytes is None or vmem_limit_bytes is None:
        try:
            vmem_cap = pltpu.get_tpu_info().vmem_capacity_bytes
        except Exception:
            vmem_cap = 64 * 1024 * 1024  # conservative (v7x-safe) fallback
        big_vmem = vmem_cap >= (100 << 20)
        if target_tile_bytes is None:
            target_tile_bytes = (6 << 20) if big_vmem else (2 << 20)
        if vmem_limit_bytes is None:
            vmem_limit_bytes = (64 << 20) if big_vmem else (32 << 20)

    # Row count of the flat problem and rows per block.
    rows_min = -(-N // W)
    tr = max(8, (target_tile_bytes // (W * 4)) // 8 * 8)
    if rows_min >= 32:
        # Keep >= ~4 grid steps: double-buffered pipelining and, on v7x, both
        # TensorCores get work via dimension_semantics=("parallel",).
        tr = min(tr, max(8, (rows_min // 4) // 8 * 8))
    tr = min(tr, -(-rows_min // 8) * 8)
    rows = -(-rows_min // tr) * tr          # pad so every block is full
    grid = (rows // tr,)

    # Batch-invariant parameters, tiled once to lane width W (W*4 bytes each;
    # negligible and VMEM-resident across the whole grid).
    reps = W // L
    inv_a_row = jnp.tile((1.0 / a.astype(f32)).reshape(1, L), (1, reps))
    b_row = jnp.tile(b.astype(f32).reshape(1, L), (1, reps))
    c_row = jnp.tile(c.astype(f32).reshape(1, L), (1, reps))
    # One-hot replication matrix R[k, j] = (j // M == k): x_block @ R broadcasts
    # each x value across its M membership-function lanes.
    R = (jnp.arange(W, dtype=jnp.int32)[None, :] // M
         == jnp.arange(K, dtype=jnp.int32)[:, None]).astype(f32)

    # x flattened + zero-padded to (rows, K).  No F*M-fold HBM repeat.
    x_flat = x.astype(f32).reshape(-1)
    x_pad = jnp.pad(x_flat, (0, rows * K - x_flat.shape[0])).reshape(rows, K)

    out_flat = pl.pallas_call(
        bell_mf_kernel,
        out_shape=jax.ShapeDtypeStruct((rows, W), out_dtype),
        grid=grid,
        in_specs=[
            pl.BlockSpec((tr, K), lambda i: (i, 0)),   # x block, streamed
            pl.BlockSpec((K, W), lambda i: (0, 0)),    # replication matrix, resident
            pl.BlockSpec((1, W), lambda i: (0, 0)),    # 1/a, resident
            pl.BlockSpec((1, W), lambda i: (0, 0)),    # b,   resident
            pl.BlockSpec((1, W), lambda i: (0, 0)),    # c,   resident
        ],
        out_specs=pl.BlockSpec((tr, W), lambda i: (i, 0)),
        compiler_params=pltpu.CompilerParams(
            dimension_semantics=("parallel",),
            vmem_limit_bytes=vmem_limit_bytes,
        ),
    )(x_pad, R, inv_a_row, b_row, c_row)

    # Flat row-major order of (rows, W) is exactly the row-major order of
    # (B, F, M) (plus trailing padding), so this is a free metadata reshape.
    return out_flat.reshape(-1)[:N].reshape(B, F, M)


if __name__ == "__main__":
    # Small shapes consistent with the module (ANFIS-style: few features, few
    # MFs).  B = 250 deliberately does not divide the tile, exercising the
    # row-padding path; rows = 64 -> grid = (8,) exercises the pipelined grid.
    B, F, M = 250, 8, 4
    key = jax.random.PRNGKey(0)
    kx, ka, kb = jax.random.split(key, 3)
    x = jax.random.normal(kx, (B, F), dtype=jnp.float32)

    # Positive, non-trivial parameters (PyTorch init is a=b=1, c=linspace; use
    # randomized positive a,b so the transcendental path is actually exercised).
    a = 0.5 + jax.random.uniform(ka, (F, M), dtype=jnp.float32)
    b = 1.0 + jax.random.uniform(kb, (F, M), dtype=jnp.float32)
    c = jnp.tile(jnp.linspace(0.0, 1.0, M, dtype=jnp.float32)[None, :], (F, 1))

    out = bell_mf(x, a, b, c)
    out = jax.block_until_ready(out)

    # Reference in plain JAX (same math/broadcasting as the PyTorch forward).
    ref = 1.0 / (1.0 + jnp.abs((x[:, :, None] - c[None]) / a[None]) ** (2.0 * b[None]))
    assert out.shape == (B, F, M)
    err = float(jnp.max(jnp.abs(out - ref)))
    assert jnp.allclose(out, ref, atol=5e-5, rtol=5e-5), err

    print("KERNEL_OK")
</pallas_src>

<mosaic_0001>
module attributes {stable_mosaic.version = 11 : i64} {
  func.func @bell_mf_kernel(%arg0: i32, %arg1: memref<8x32xf32, #tpu.memory_space<vmem>>, %arg2: memref<32x128xf32, #tpu.memory_space<vmem>>, %arg3: memref<1x128xf32, #tpu.memory_space<vmem>>, %arg4: memref<1x128xf32, #tpu.memory_space<vmem>>, %arg5: memref<1x128xf32, #tpu.memory_space<vmem>>, %arg6: memref<8x128xf32, #tpu.memory_space<vmem>>) attributes {dimension_semantics = [#tpu.dimension_semantics<parallel>], iteration_bounds = array<i64: 8>, scalar_prefetch = 0 : i64, scratch_operands = 0 : i64, tpu.core_type = #tpu.core_type<tc>, window_params = [{transform_indices = @transform_0, window_bounds = array<i64: 8, 32>}, {pipeline_mode = #tpu.pipeline_mode<synchronous>, transform_indices = @transform_1, window_bounds = array<i64: 32, 128>}, {pipeline_mode = #tpu.pipeline_mode<synchronous>, transform_indices = @transform_2, window_bounds = array<i64: 1, 128>}, {pipeline_mode = #tpu.pipeline_mode<synchronous>, transform_indices = @transform_3, window_bounds = array<i64: 1, 128>}, {pipeline_mode = #tpu.pipeline_mode<synchronous>, transform_indices = @transform_4, window_bounds = array<i64: 1, 128>}, {transform_indices = @transform_5, window_bounds = array<i64: 8, 128>}]} {
    %c0 = arith.constant 0 : index
    %c0_0 = arith.constant 0 : index
    %0 = vector.load %arg1[%c0, %c0_0] : memref<8x32xf32, #tpu.memory_space<vmem>>, vector<8x32xf32>
    %c0_1 = arith.constant 0 : index
    %c0_2 = arith.constant 0 : index
    %1 = vector.load %arg2[%c0_1, %c0_2] : memref<32x128xf32, #tpu.memory_space<vmem>>, vector<32x128xf32>
    %cst = arith.constant dense<0.000000e+00> : vector<8x128xf32>
    %2 = tpu.matmul %0, %1, %cst {dimension_numbers = #tpu.dot_dimension_numbers<[1], [0], [0], [1], [0, 0, 1, 1], [], []>} : vector<8x32xf32>, vector<32x128xf32>, vector<8x128xf32> -> vector<8x128xf32>
    %c0_3 = arith.constant 0 : index
    %c0_4 = arith.constant 0 : index
    %3 = vector.load %arg5[%c0_3, %c0_4] : memref<1x128xf32, #tpu.memory_space<vmem>>, vector<1x128xf32>
    %4 = vector.broadcast %3 : vector<1x128xf32> to vector<8x128xf32>
    %5 = arith.subf %2, %4 : vector<8x128xf32>
    %c0_5 = arith.constant 0 : index
    %c0_6 = arith.constant 0 : index
    %6 = vector.load %arg3[%c0_5, %c0_6] : memref<1x128xf32, #tpu.memory_space<vmem>>, vector<1x128xf32>
    %7 = vector.broadcast %6 : vector<1x128xf32> to vector<8x128xf32>
    %8 = arith.mulf %5, %7 : vector<8x128xf32>
    %9 = arith.mulf %8, %8 : vector<8x128xf32>
    %c0_7 = arith.constant 0 : index
    %c0_8 = arith.constant 0 : index
    %10 = vector.load %arg4[%c0_7, %c0_8] : memref<1x128xf32, #tpu.memory_space<vmem>>, vector<1x128xf32>
    %cst_9 = arith.constant 5.000000e-01 : f32
    %11 = vector.broadcast %cst_9 : f32 to vector<1x128xf32>
    %12 = arith.mulf %11, %10 : vector<1x128xf32>
    %13 = math.log %9 : vector<8x128xf32>
    %14 = vector.broadcast %12 : vector<1x128xf32> to vector<8x128xf32>
    %15 = arith.mulf %14, %13 : vector<8x128xf32>
    %16 = math.tanh %15 : vector<8x128xf32>
    %cst_10 = arith.constant 1.000000e+00 : f32
    %17 = vector.broadcast %cst_10 : f32 to vector<8x128xf32>
    %18 = arith.subf %17, %16 : vector<8x128xf32>
    %cst_11 = arith.constant 5.000000e-01 : f32
    %19 = vector.broadcast %cst_11 : f32 to vector<8x128xf32>
    %20 = arith.mulf %19, %18 : vector<8x128xf32>
    %c0_12 = arith.constant 0 : index
    %c0_13 = arith.constant 0 : index
    %21 = vector.load %arg6[%c0_12, %c0_13] : memref<8x128xf32, #tpu.memory_space<vmem>>, vector<8x128xf32>
    tpu.vector_store %arg6[%c0_12, %c0_13], %20 {strides = array<i32>} : memref<8x128xf32, #tpu.memory_space<vmem>>, vector<8x128xf32>,
    return
  }
  func.func @transform_0(%arg0: i32) -> (i32, i32) {
    %c0_i32 = arith.constant 0 : i32
    %c0_i32_0 = arith.constant 0 : i32
    return %arg0, %c0_i32 : i32, i32
  }
  func.func @transform_1(%arg0: i32) -> (i32, i32) {
    %c0_i32 = arith.constant 0 : i32
    %c0_i32_0 = arith.constant 0 : i32
    %c0_i32_1 = arith.constant 0 : i32
    return %c0_i32, %c0_i32_0 : i32, i32
  }
  func.func @transform_2(%arg0: i32) -> (i32, i32) {
    %c0_i32 = arith.constant 0 : i32
    %c0_i32_0 = arith.constant 0 : i32
    %c0_i32_1 = arith.constant 0 : i32
    return %c0_i32, %c0_i32_0 : i32, i32
  }
  func.func @transform_3(%arg0: i32) -> (i32, i32) {
    %c0_i32 = arith.constant 0 : i32
    %c0_i32_0 = arith.constant 0 : i32
    %c0_i32_1 = arith.constant 0 : i32
    return %c0_i32, %c0_i32_0 : i32, i32
  }
  func.func @transform_4(%arg0: i32) -> (i32, i32) {
    %c0_i32 = arith.constant 0 : i32
    %c0_i32_0 = arith.constant 0 : i32
    %c0_i32_1 = arith.constant 0 : i32
    return %c0_i32, %c0_i32_0 : i32, i32
  }
  func.func @transform_5(%arg0: i32) -> (i32, i32) {
    %c0_i32 = arith.constant 0 : i32
    %c0_i32_0 = arith.constant 0 : i32
    return %arg0, %c0_i32 : i32, i32
  }
}

</mosaic_0001>

<llo_original>
// kernel: tpu_custom_call.1
$region0: #{tpu_custom_call.1}
  #allocation0 [shape = 'u32[]', space=smem, size = 0x4, offset = 0x4, fixed_abs, tag = 'smem constant byte address 0x4 - core index']
  #allocation1 [shape = 'u32[144,128]{1,0:T(1,128)}', space=vmem, size = 0x12000, scoped, tag = 'internal scratch']
  %s0 = inlined_call_operand.vmem [shape: f32[64,32], index: 0, kind: input, shape index: {}]
  %s1 = inlined_call_operand.vmem [shape: f32[32,128], index: 1, kind: input, shape index: {}]
  %s2 = inlined_call_operand.vmem [shape: f32[1,128], index: 2, kind: input, shape index: {}]
  %s3 = inlined_call_operand.vmem [shape: f32[1,128], index: 3, kind: input, shape index: {}]
  %s4 = inlined_call_operand.vmem [shape: f32[1,128], index: 4, kind: input, shape index: {}]
  %s5 = inlined_call_operand.hbm [shape: f32[64,128], index: 5, kind: output, shape index: {}]
  %s6 = sld [smem:[#allocation0]]
  $region53: #{tpu_custom_call.1} parent=0
    _
  %s8 = ssub.s32 1, %s6
  %s9 = scalar_select 0, %s8, %s6
  $region1: #{tpu_custom_call.1} parent=0
    #allocation2 [shape = 'u8[8192]{0}', space=vmem, size = 0x2000, scoped, tag = 'output window, operand 0']
    #allocation3 [shape = 's32[2]{0}', space=sflag, size = 0x8, scoped, tag = 'scoped memory for tpu_custom_call.1']
    %10 = vsyncpa [#allocation3], 0
    %s11 = scalar_lea.sflag [#allocation3], 1
    %12 = vsyncpa %s11, 0
    loop: start=0, step=1, limit=10
    $region2: #{tpu_custom_call.1} parent=1 // loop_pre_header
      _
    $region3: #{tpu_custom_call.1} parent=1 // loop_header
      %s14 = sphi 0, %s18
      %p15 = scmp.ge.s32.totalorder %s14, 10
      %s24 = sphi 0, %s26
      %s27 = sphi 0, %s24
      %s28 = sphi 0, %s27
      %s44 = sphi 0, %s28
      %s48 = sphi 0, %s48
      %s50 = sphi 0, %s48
      %s51 = sphi 0, %s50
      %s65 = sphi 0, %s51
      %s69 = sphi 0, %s69
      %s71 = sphi 0, %s69
      %s72 = sphi 0, %s71
      %s86 = sphi 0, %s72
      %s90 = sphi 0, %s90
      %s92 = sphi 0, %s90
      %s93 = sphi 0, %s92
      %s107 = sphi 0, %s93
      %s111 = sphi 0, %s111
      %s113 = sphi 0, %s111
      %s114 = sphi 0, %s113
      %s128 = sphi 0, %s114
      %s134 = sphi 0, %s136
      %s137 = sphi 0, %s134
      %s138 = sphi 0, %s137
      %s154 = sphi 0, %s138
    $region4: #{tpu_custom_call.1} parent=1 // loop_header_branch
      %17 = sbr.rel (%p15) target = $region8
    $region5: #{tpu_custom_call.1} parent=1 // loop_body
      %s19 = ssub.s32 %s14, 1
      %s20 = ssub.s32 %s14, 2
      %s21 = sadd.s32 %s14, 1
      %s22 = ssub.s32 %s14, %s21
      %p23 = scmp.eq.s32.totalorder %s22, 0
      %s25 = sadd.s32 %s24, 1
      %s26 = scalar_select %p23, %s24, %s25
      %p29 = pneg %p23
      %p30 = scmp.eq.s32.totalorder %s14, 7
      %p31 = por %p29, %p30
      %p32 = scmp.ne.s32.totalorder %s24, %s27
      %p33 = scmp.eq.s32.totalorder %s14, 0
      %p34 = por %p32, %p33
      %p35 = scmp.ne.s32.totalorder %s24, %s27
      %p36 = scmp.eq.s32.totalorder %s19, 7
      %p37 = por %p35, %p36
      %p38 = scmp.ne.s32.totalorder %s27, %s28
      %p39 = scmp.eq.s32.totalorder %s19, 0
      %p40 = por %p38, %p39
      %p41 = scmp.ne.s32.totalorder %s27, %s28
      %p42 = scmp.eq.s32.totalorder %s20, 7
      %p43 = por %p41, %p42
      %p45 = scmp.ne.s32.totalorder %s28, %s44
      %p46 = scmp.eq.s32.totalorder %s20, 0
      %p47 = por %p45, %p46
      %s49 = sadd.s32 %s48, 1
      %p52 = scmp.eq.s32.totalorder %s14, 7
      %p53 = scmp.ne.s32.totalorder %s48, %s50
      %p54 = scmp.eq.s32.totalorder %s14, 0
      %p55 = por %p53, %p54
      %p56 = scmp.ne.s32.totalorder %s48, %s50
      %p57 = scmp.eq.s32.totalorder %s19, 7
      %p58 = por %p56, %p57
      %p59 = scmp.ne.s32.totalorder %s50, %s51
      %p60 = scmp.eq.s32.totalorder %s19, 0
      %p61 = por %p59, %p60
      %p62 = scmp.ne.s32.totalorder %s50, %s51
      %p63 = scmp.eq.s32.totalorder %s20, 7
      %p64 = por %p62, %p63
      %p66 = scmp.ne.s32.totalorder %s51, %s65
      %p67 = scmp.eq.s32.totalorder %s20, 0
      %p68 = por %p66, %p67
      %s70 = sadd.s32 %s69, 1
      %p73 = scmp.eq.s32.totalorder %s14, 7
      %p74 = scmp.ne.s32.totalorder %s69, %s71
      %p75 = scmp.eq.s32.totalorder %s14, 0
      %p76 = por %p74, %p75
      %p77 = scmp.ne.s32.totalorder %s69, %s71
      %p78 = scmp.eq.s32.totalorder %s19, 7
      %p79 = por %p77, %p78
      %p80 = scmp.ne.s32.totalorder %s71, %s72
      %p81 = scmp.eq.s32.totalorder %s19, 0
      %p82 = por %p80, %p81
      %p83 = scmp.ne.s32.totalorder %s71, %s72
      %p84 = scmp.eq.s32.totalorder %s20, 7
      %p85 = por %p83, %p84
      %p87 = scmp.ne.s32.totalorder %s72, %s86
      %p88 = scmp.eq.s32.totalorder %s20, 0
      %p89 = por %p87, %p88
      %s91 = sadd.s32 %s90, 1
      %p94 = scmp.eq.s32.totalorder %s14, 7
      %p95 = scmp.ne.s32.totalorder %s90, %s92
      %p96 = scmp.eq.s32.totalorder %s14, 0
      %p97 = por %p95, %p96
      %p98 = scmp.ne.s32.totalorder %s90, %s92
      %p99 = scmp.eq.s32.totalorder %s19, 7
      %p100 = por %p98, %p99
      %p101 = scmp.ne.s32.totalorder %s92, %s93
      %p102 = scmp.eq.s32.totalorder %s19, 0
      %p103 = por %p101, %p102
      %p104 = scmp.ne.s32.totalorder %s92, %s93
      %p105 = scmp.eq.s32.totalorder %s20, 7
      %p106 = por %p104, %p105
      %p108 = scmp.ne.s32.totalorder %s93, %s107
      %p109 = scmp.eq.s32.totalorder %s20, 0
      %p110 = por %p108, %p109
      %s112 = sadd.s32 %s111, 1
      %p115 = scmp.eq.s32.totalorder %s14, 7
      %p116 = scmp.ne.s32.totalorder %s111, %s113
      %p117 = scmp.eq.s32.totalorder %s14, 0
      %p118 = por %p116, %p117
      %p119 = scmp.ne.s32.totalorder %s111, %s113
      %p120 = scmp.eq.s32.totalorder %s19, 7
      %p121 = por %p119, %p120
      %p122 = scmp.ne.s32.totalorder %s113, %s114
      %p123 = scmp.eq.s32.totalorder %s19, 0
      %p124 = por %p122, %p123
      %p125 = scmp.ne.s32.totalorder %s113, %s114
      %p126 = scmp.eq.s32.totalorder %s20, 7
      %p127 = por %p125, %p126
      %p129 = scmp.ne.s32.totalorder %s114, %s128
      %p130 = scmp.eq.s32.totalorder %s20, 0
      %p131 = por %p129, %p130
      %s132 = ssub.s32 %s14, %s21
      %p133 = scmp.eq.s32.totalorder %s132, 0
      %s135 = sadd.s32 %s134, 1
      %s136 = scalar_select %p133, %s134, %s135
      %p139 = pneg %p133
      %p140 = scmp.eq.s32.totalorder %s14, 7
      %p141 = por %p139, %p140
      %p142 = scmp.ne.s32.totalorder %s134, %s137
      %p143 = scmp.eq.s32.totalorder %s14, 0
      %p144 = por %p142, %p143
      %p145 = scmp.ne.s32.totalorder %s134, %s137
      %p146 = scmp.eq.s32.totalorder %s19, 7
      %p147 = por %p145, %p146
      %p148 = scmp.ne.s32.totalorder %s137, %s138
      %p149 = scmp.eq.s32.totalorder %s19, 0
      %p150 = por %p148, %p149
      %p151 = scmp.ne.s32.totalorder %s137, %s138
      %p152 = scmp.eq.s32.totalorder %s20, 7
      %p153 = por %p151, %p152
      %p155 = scmp.ne.s32.totalorder %s138, %s154
      %p156 = scmp.eq.s32.totalorder %s20, 0
      %p157 = por %p155, %p156
      %p158 = scmp.le.s32.totalorder 1, %s14
      %p159 = scmp.lt.s32.totalorder %s14, 9
      %p160 = pnand %p158, %p159
      %p161 = pneg %p160
      // Predicated region
      $region9: #{tpu_custom_call.1} parent=5 // pred_check
        _
      $region10: #{tpu_custom_call.1} parent=5 // pred_check_branch
        %163 = sbr.rel (%p160) target = $region12
      $region11: #{tpu_custom_call.1} parent=5 // pred_region
        %s164 = ssub.s32 %s14, 1
        // Predicated region
        $region13: #{tpu_custom_call.1} parent=11 // pred_check
          %p165 = pneg %p61
        $region14: #{tpu_custom_call.1} parent=11 // pred_check_branch
          %167 = sbr.rel (%p165) target = $region16
        $region15: #{tpu_custom_call.1} parent=11 // pred_region
          _
        $region16: #{tpu_custom_call.1} parent=11 // pred_fallthru
          _
        // Predicated region
        $region17: #{tpu_custom_call.1} parent=11 // pred_check
          %p168 = pneg %p82
        $region18: #{tpu_custom_call.1} parent=11 // pred_check_branch
          %170 = sbr.rel (%p168) target = $region20
        $region19: #{tpu_custom_call.1} parent=11 // pred_region
          _
        $region20: #{tpu_custom_call.1} parent=11 // pred_fallthru
          _
        // Predicated region
        $region21: #{tpu_custom_call.1} parent=11 // pred_check
          %p171 = pneg %p103
        $region22: #{tpu_custom_call.1} parent=11 // pred_check_branch
          %173 = sbr.rel (%p171) target = $region24
        $region23: #{tpu_custom_call.1} parent=11 // pred_region
          _
        $region24: #{tpu_custom_call.1} parent=11 // pred_fallthru
          _
        // Predicated region
        $region25: #{tpu_custom_call.1} parent=11 // pred_check
          %p174 = pneg %p124
        $region26: #{tpu_custom_call.1} parent=11 // pred_check_branch
          %176 = sbr.rel (%p174) target = $region28
        $region27: #{tpu_custom_call.1} parent=11 // pred_region
          _
        $region28: #{tpu_custom_call.1} parent=11 // pred_fallthru
          _
      $region12: #{tpu_custom_call.1} parent=5 // pred_fallthru
        _
      %p177 = scmp.lt.s32.totalorder %s14, 8
      // Predicated region
      $region29: #{tpu_custom_call.1} parent=5 // pred_check
        %p178 = pneg %p177
      $region30: #{tpu_custom_call.1} parent=5 // pred_check_branch
        %180 = sbr.rel (%p178) target = $region32
      $region31: #{tpu_custom_call.1} parent=5 // pred_region
        // Predicated region
        $region33: #{tpu_custom_call.1} parent=31 // pred_check
          %p181 = pneg %p34
        $region34: #{tpu_custom_call.1} parent=31 // pred_check_branch
          %183 = sbr.rel (%p181) target = $region36
        $region35: #{tpu_custom_call.1} parent=31 // pred_region
          %p184 = scmp.lt.s32.totalorder %s14, 7
          %s185 = scalar_select %p184, %s14, 7
          %s186 = smul.addr %s185, 8
          %s187 = scalar_lea.vmem %s0, %s186
        $region36: #{tpu_custom_call.1} parent=31 // pred_fallthru
          _
      $region32: #{tpu_custom_call.1} parent=5 // pred_fallthru
        _
      %p188 = scmp.le.s32.totalorder 1, %s14
      %p189 = scmp.lt.s32.totalorder %s14, 9
      %p190 = pnand %p188, %p189
      %p191 = pneg %p190
      // Predicated region
      $region37: #{tpu_custom_call.1} parent=5 // pred_check
        _
      $region38: #{tpu_custom_call.1} parent=5 // pred_check_branch
        %193 = sbr.rel (%p190) target = $region40
      $region39: #{tpu_custom_call.1} parent=5 // pred_region
        %s194 = ssub.s32 %s14, 1
        %p195 = scmp.lt.s32.totalorder %s19, 7
        %s196 = scalar_select %p195, %s19, 7
        %s197 = smul.addr %s196, 8
        %s198 = scalar_lea.vmem %s0, %s197
        %p199 = pneg %p40
        %p200 = pneg %p37
        %p201 = pneg %p61
        %p202 = pneg %p58
        %p203 = pneg %p82
        %p204 = pneg %p79
        %p205 = pneg %p103
        %p206 = pneg %p100
        %p207 = pneg %p124
        %p208 = pneg %p121
        %p209 = pneg %p150
        %p210 = pneg %p147
        %s211 = sand.u32 %s137, 1
        %s212 = scalar_lea.sflag [#allocation3], %s211
        %s213 = sand.u32 %s137, 1
        %s214 = smul.addr %s213, 8
        %s215 = scalar_lea.vmem [#allocation2], %s214
        %p216 = scmp.lt.s32.totalorder %s19, 7
        %s217 = scalar_select %p216, %s19, 7
        %s218 = smul.addr %s217, 8
        %s219 = scalar_lea.vmem %s0, %s218
        %v220 = vld [vmem:[%s219] sm:$0xff]
        %v221 = vld [vmem:[%s1] sm:$0xff]
        %v222 = vld [vmem:[%s1 + $0x8] sm:$0xff]
        %v223 = vld [vmem:[%s1 + $0x10] sm:$0xff]
        %v224 = vld [vmem:[%s1 + $0x18] sm:$0xff]
        %vm225 = vcmask 261120
        %v227 = vsel %vm225, %v220, 0
        %229 = vmatprep.subr.mxu0 0.0
        %230 = vmatpush1.msra.mxu0 0.0
        %231 = vmatprep.subr.mxu0 0.0
        %232 = vmatpush1.msra.mxu0 0.0
        %233 = vmatprep.subr.mxu0 0.0
        %234 = vmatpush1.msra.mxu0 0.0
        %235 = vmatprep.subr.mxu0 0.0
        %236 = vmatpush1.msra.mxu0 0.0
        %237 = vmatprep.subr.mxu0 0.0
        %238 = vmatpush1.msra.mxu0 0.0
        %239 = vmatprep.subr.mxu0 0.0
        %240 = vmatpush1.msra.mxu0 0.0
        %241 = vmatprep.subr.mxu0 0.0
        %242 = vmatpush1.msra.mxu0 0.0
        %243 = vmatprep.subr.mxu0 0.0
        %244 = vmatpush1.msra.mxu0 0.0
        %245 = vmatprep.subr.mxu0 0.0
        %246 = vmatpush1.msra.mxu0 0.0
        %247 = vmatprep.subr.mxu0 0.0
        %248 = vmatpush1.msra.mxu0 0.0
        %249 = vmatprep.subr.mxu0 0.0
        %250 = vmatpush1.msra.mxu0 0.0
        %251 = vmatprep.subr.mxu0 0.0
        %252 = vmatpush1.msra.mxu0 0.0
        %253 = vmatprep.subr.mxu0 0.0
        %254 = vmatpush1.msra.mxu0 %v224
        %255 = vmatprep.subr.mxu0 0.0
        %256 = vmatpush1.msra.mxu0 %v223
        %257 = vmatprep.subr.mxu0 0.0
        %258 = vmatpush1.msra.mxu0 %v222
        %259 = vmatprep.subr.mxu0 0.0
        %260 = vmatpush1.msra.mxu0 %v221
        %261 = vmatprep.subr.mxu0 0.0
        %262 = vmatpush2.msra.mxu0 0.0
        %263 = vmatprep.subr.mxu0 0.0
        %264 = vmatpush2.msra.mxu0 0.0
        %265 = vmatprep.subr.mxu0 0.0
        %266 = vmatpush2.msra.mxu0 0.0
        %267 = vmatprep.subr.mxu0 0.0
        %268 = vmatpush2.msra.mxu0 0.0
        %269 = vmatprep.subr.mxu0 0.0
        %270 = vmatpush2.msra.mxu0 0.0
        %271 = vmatprep.subr.mxu0 0.0
        %272 = vmatpush2.msra.mxu0 0.0
        %273 = vmatprep.subr.mxu0 0.0
        %274 = vmatpush2.msra.mxu0 0.0
        %275 = vmatprep.subr.mxu0 0.0
        %276 = vmatpush2.msra.mxu0 0.0
        %277 = vmatprep.subr.mxu0 0.0
        %278 = vmatpush2.msra.mxu0 0.0
        %279 = vmatprep.subr.mxu0 0.0
        %280 = vmatpush2.msra.mxu0 0.0
        %281 = vmatprep.subr.mxu0 0.0
        %282 = vmatpush2.msra.mxu0 0.0
        %283 = vmatprep.subr.mxu0 0.0
        %284 = vmatpush2.msra.mxu0 0.0
        %285 = vmatprep.subr.mxu0 0.0
        %286 = vmatpush2.msra.mxu0 0.0
        %287 = vmatprep.subr.mxu0 0.0
        %288 = vmatpush2.msra.mxu0 0.0
        %289 = vmatprep.subr.mxu0 0.0
        %290 = vmatpush2.msra.mxu0 0.0
        %291 = vmatprep.subr.mxu0 0.0
        %292 = vmatpush2.msra.mxu0 0.0
        %293 = vmatprep.mubr.f32.mxu0 0.0
        %294 = vmatmul.mubr.f32.gmra.mxu0 %v227
        %v295 = vpop.f32.mrf.mxu0
        %v296 = vadd.f32 0.0, %v295
        %v297 = vpop.f32.mrf.mxu0
        %298 = vdwg.mxu0
        %v299 = vld [vmem:[%s4] sm:$0x1]
        %v301 = vlaneseq
        %v302 = vshrl.u32 %v301, 7
        %v303 = vsub.s32 0, %v302
        %v304 = vrot.slane %v299, %v303
        %v306 = vsub.f32 %v296, %v304
        %v307 = vld [vmem:[%s2] sm:$0x1]
        %v309 = vlaneseq
        %v310 = vshrl.u32 %v309, 7
        %v311 = vsub.s32 0, %v310
        %v312 = vrot.slane %v307, %v311
        %v314 = vmul.f32 %v306, %v312
        %v315 = vmul.f32 %v314, %v314
        %v316 = vld [vmem:[%s3] sm:$0x1]
        %v317 = vmul.f32 %v316, 0.5
        %v318 = vlog2.pop %v315
        %v319 = vmul.f32 %v318, 0.6931472
        %v321 = vlaneseq
        %v322 = vshrl.u32 %v321, 7
        %v323 = vsub.s32 0, %v322
        %v324 = vrot.slane %v317, %v323
        %v326 = vmul.f32 %v324, %v319
        %v327 = vtanh.pop %v326
        %v328 = vsub.f32 1.0, %v327
        %v329 = vmul.f32 %v328, 0.5
        %330 = vst [vmem:[%s215] sm:$0xff] %v329
        %s331 = sand.u32 %s137, 1
        %s332 = scalar_lea.sflag [#allocation3], %s331
        %s333 = sand.u32 %s137, 1
        %s334 = smul.addr %s333, 8
        %s335 = scalar_lea.vmem [#allocation2], %s334
        // Predicated region
        $region41: #{tpu_custom_call.1} parent=39 // pred_check
          %p336 = pneg %p147
        $region42: #{tpu_custom_call.1} parent=39 // pred_check_branch
          %338 = sbr.rel (%p336) target = $region44
        $region43: #{tpu_custom_call.1} parent=39 // pred_region
          %s340 = ssub.s32 128, 128
          %341 = vsyncadd %s332, %s340
          %s342 = smul.addr %s19, 128
          %s343 = scalar_lea.hbm %s5, %s342
          %s345 = sshll.u32 %s335, 4
          %s346 = int_to_ptr.vmem [resolvable:$true] %s345
          %348 = dma.vmem_to_hbm [thread:$0]  %s346, 128, %s343, %s332
        $region44: #{tpu_custom_call.1} parent=39 // pred_fallthru
          _
      $region40: #{tpu_custom_call.1} parent=5 // pred_fallthru
        _
      %p349 = scmp.le.s32.totalorder 2, %s14
      // Predicated region
      $region45: #{tpu_custom_call.1} parent=5 // pred_check
        %p350 = pneg %p349
      $region46: #{tpu_custom_call.1} parent=5 // pred_check_branch
        %352 = sbr.rel (%p350) target = $region48
      $region47: #{tpu_custom_call.1} parent=5 // pred_region
        %s353 = ssub.s32 %s14, 2
        // Predicated region
        $region49: #{tpu_custom_call.1} parent=47 // pred_check
          %p354 = pneg %p153
        $region50: #{tpu_custom_call.1} parent=47 // pred_check_branch
          %356 = sbr.rel (%p354) target = $region52
        $region51: #{tpu_custom_call.1} parent=47 // pred_region
          %s357 = sand.u32 %s138, 1
          %s358 = scalar_lea.sflag [#allocation3], %s357
          %s359 = sand.u32 %s138, 1
          %s360 = smul.addr %s359, 8
          %s361 = scalar_lea.vmem [#allocation2], %s360
          %362 = dma.done %s358, 128
        $region52: #{tpu_custom_call.1} parent=47 // pred_fallthru
          _
      $region48: #{tpu_custom_call.1} parent=5 // pred_fallthru
        _
    $region6: #{tpu_custom_call.1} parent=1 // loop_footer
      %s18 = sadd.s32 1, %s14
    $region7: #{tpu_custom_call.1} parent=1 // loop_footer_branch
      %13 = sbr.rel target = $region3
    $region8: #{tpu_custom_call.1} parent=1 // loop_exit
      _
    %363 = vsyncpa [#allocation3], 1
    %s364 = scalar_lea.sflag [#allocation3], 1
    %365 = vsyncpa %s364, 1

</llo_original>
